<compile_context>
chip_gen: v7x
topology: tpu7x:2x2x1
jax: 0.10.0
libtpu: 0.0.40
codegen_flags: <defaults>
</compile_context>

<pallas_src>
import functools

import jax
import jax.numpy as jnp
from jax.experimental import pallas as pl
from jax.experimental.pallas import tpu as pltpu

LANES = 128
MAX_BLOCK_ROWS = 4096          # 4096 * 128 * 4 B = 2 MiB per f32 input block
MIN_ROWS_PER_SHARD = 512       # don't split tiny inputs across cores
VMEM_LIMIT_BYTES = 32 * 1024 * 1024

W_L = (1.0, 20.0, 50.0, 100.0, 300.0)
Y_L = (1.0 / 20, 10.0 / 20, 20.0 / 20, 50.0 / 20, 100.0 / 20)


def _round_up(v, m):
    return ((v + m - 1) // m) * m


def _sublane_tile(dtype):
    # Packed sublane tile: f32 -> 8, bf16/f16 -> 16, int8/fp8 -> 32.
    return {4: 8, 2: 16, 1: 32}.get(jnp.dtype(dtype).itemsize, 8)


def _chained_weight(y_f32):
    # Exact mirror of the PyTorch loop: each w[w < y_l[i]] = w_l[i] sees the
    # *updated* w from the earlier steps (chained thresholding).
    w = y_f32
    for wl, yl in zip(W_L, Y_L):
        w = jnp.where(w < yl, jnp.float32(wl), w)
    return w


def _bmse_kernel(x_ref, y_ref, out_ref, *, rows, block_rows, blocks_per_shard):
    c = pl.program_id(0)            # shard (TensorCore) index
    i = pl.program_id(1)            # block index within the shard

    @pl.when(i == 0)
    def _():
        out_ref[...] = jnp.zeros_like(out_ref)

    # Upcast in-register; HBM traffic stays in the caller's dtype.
    x = x_ref[...].astype(jnp.float32)
    y = y_ref[...].astype(jnp.float32)

    w = _chained_weight(y)
    diff = y - x
    contrib = w * diff * diff

    row_start = (c * blocks_per_shard + i) * block_rows

    # Steady-state (fully in-bounds) blocks: no masking at all.
    @pl.when(row_start + block_rows <= rows)
    def _():
        out_ref[...] += contrib.reshape(block_rows // 8, 8, LANES).sum(axis=0)

    # Only the (at most one) row-ragged block per shard pays the masking cost.
    @pl.when(row_start + block_rows > rows)
    def _():
        row_ids = row_start + jax.lax.broadcasted_iota(
            jnp.int32, (block_rows, 1), 0)
        masked = jnp.where(row_ids < rows, contrib, 0.0)
        out_ref[...] += masked.reshape(block_rows // 8, 8, LANES).sum(axis=0)


def bmse_loss(x, y):
    """Pallas implementation of BMSELoss.forward -> scalar float32."""
    assert x.shape == y.shape, (x.shape, y.shape)
    n = x.size
    if n == 0:
        return jnp.float32(jnp.nan)  # torch.mean of an empty tensor is nan

    xf = x.reshape(-1)
    yf = y.reshape(-1)
    rows = n // LANES               # lane-aligned rows handled by the kernel
    main = rows * LANES
    tail = n - main                 # < 128 elements

    # Ragged lane tail: trivial jnp expression, no full-tensor pad/copy.
    if tail:
        xt = xf[main:].astype(jnp.float32)
        yt = yf[main:].astype(jnp.float32)
        tail_sum = jnp.sum(_chained_weight(yt) * (yt - xt) ** 2)
    else:
        tail_sum = jnp.float32(0.0)

    if rows == 0:                   # everything fit in the tail
        return tail_sum / jnp.float32(n)

    tile = max(_sublane_tile(x.dtype), _sublane_tile(y.dtype))

    if rows >= 2 * MIN_ROWS_PER_SHARD:
        # 2 shards (one per TensorCore on v7x; a cheap 2-iteration outer loop
        # elsewhere).  block_rows is chosen so the blocks divide evenly across
        # shards -> no redundant clamped-block DMA.
        num_shards = 2
        blocks_per_shard = pl.cdiv(rows, num_shards * MAX_BLOCK_ROWS)
        block_rows = _round_up(
            pl.cdiv(rows, num_shards * blocks_per_shard), tile)
    else:
        num_shards = 1
        block_rows = min(MAX_BLOCK_ROWS, _round_up(rows, tile))
        blocks_per_shard = pl.cdiv(rows, block_rows)

    if tail:
        # TODO(synk): XLA may materialize this prefix slice; a fully copy-free
        # ragged path would need in-kernel lane masking on the flat buffer.
        x2d = xf[:main].reshape(rows, LANES)
        y2d = yf[:main].reshape(rows, LANES)
    else:
        x2d = xf.reshape(rows, LANES)   # bitcast-only reshapes
        y2d = yf.reshape(rows, LANES)

    last_block = pl.cdiv(rows, block_rows) - 1

    def in_map(c, i):
        # Steady-state blocks are always in range; the clamp is a pure-scalar
        # safety net for the (rare, huge-tensor) fully-out-of-range block.
        return (jnp.minimum(c * blocks_per_shard + i, last_block), 0)

    kernel = functools.partial(
        _bmse_kernel, rows=rows, block_rows=block_rows,
        blocks_per_shard=blocks_per_shard)

    bytes_in = main * (jnp.dtype(x.dtype).itemsize
                       + jnp.dtype(y.dtype).itemsize)
    cost = pl.CostEstimate(
        flops=15 * main,
        transcendentals=0,
        bytes_accessed=bytes_in + num_shards * 8 * LANES * 4)

    partials = pl.pallas_call(
        kernel,
        out_shape=jax.ShapeDtypeStruct((num_shards * 8, LANES), jnp.float32),
        grid=(num_shards, blocks_per_shard),
        in_specs=[
            pl.BlockSpec((block_rows, LANES), in_map),
            pl.BlockSpec((block_rows, LANES), in_map),
        ],
        out_specs=pl.BlockSpec((8, LANES), lambda c, i: (c, 0)),
        compiler_params=pltpu.CompilerParams(
            dimension_semantics=("parallel", "arbitrary"),
            vmem_limit_bytes=VMEM_LIMIT_BYTES),
        cost_estimate=cost,
    )(x2d, y2d)

    # One tiny final reduce + mean in the wrapper.
    return (jnp.sum(partials) + tail_sum) / jnp.float32(n)


def bmse_loss_ref(x, y):
    xf = x.astype(jnp.float32)
    yf = y.astype(jnp.float32)
    return jnp.mean(_chained_weight(yf) * (yf - xf) ** 2)


if __name__ == "__main__":
    key = jax.random.PRNGKey(0)
    keys = jax.random.split(key, 6)

    # 1) Small NCHW, n % 128 == 0: zero-copy path, single block.
    y1 = jax.random.uniform(keys[0], (2, 4, 16, 16), dtype=jnp.float32) * 8.0
    x1 = y1 + 0.5 * jax.random.normal(keys[1], (2, 4, 16, 16), dtype=jnp.float32)
    l1 = bmse_loss(x1, y1)
    jax.block_until_ready(l1)
    r1 = bmse_loss_ref(x1, y1)
    assert jnp.allclose(l1, r1, rtol=1e-5, atol=1e-5), (l1, r1)

    # 2) Ragged size (n % 128 != 0): kernel on the aligned prefix, tail in jnp.
    y2 = jax.random.uniform(keys[2], (3, 5, 7, 11), dtype=jnp.float32) * 8.0
    x2 = y2 + 0.5 * jax.random.normal(keys[3], (3, 5, 7, 11), dtype=jnp.float32)
    l2 = bmse_loss(x2, y2)
    jax.block_until_ready(l2)
    r2 = bmse_loss_ref(x2, y2)
    assert jnp.allclose(l2, r2, rtol=1e-5, atol=1e-5), (l2, r2)

    # 3) Moderate bf16 input: exercises the 2-shard grid, the 16-row bf16
    #    sublane tile and the in-register upcast.
    y3 = (jax.random.uniform(keys[4], (4, 8, 64, 64), dtype=jnp.float32) * 8.0
          ).astype(jnp.bfloat16)
    x3 = (y3.astype(jnp.float32)
          + 0.5 * jax.random.normal(keys[5], (4, 8, 64, 64), dtype=jnp.float32)
          ).astype(jnp.bfloat16)
    l3 = bmse_loss(x3, y3)
    jax.block_until_ready(l3)
    r3 = bmse_loss_ref(x3, y3)
    assert jnp.allclose(l3, r3, rtol=1e-4, atol=1e-4), (l3, r3)

    print("KERNEL_OK")
</pallas_src>

<mosaic_0001>
module attributes {stable_mosaic.version = 11 : i64} {
  func.func @_bmse_kernel(%arg0: i32, %arg1: i32, %arg2: memref<16x128xf32, #tpu.memory_space<vmem>>, %arg3: memref<16x128xf32, #tpu.memory_space<vmem>>, %arg4: memref<8x128xf32, #tpu.memory_space<vmem>>) attributes {dimension_semantics = [#tpu.dimension_semantics<parallel>, #tpu.dimension_semantics<arbitrary>], iteration_bounds = array<i64: 1, 1>, scalar_prefetch = 0 : i64, scratch_operands = 0 : i64, tpu.core_type = #tpu.core_type<tc>, window_params = [{transform_indices = @transform_0, window_bounds = array<i64: 16, 128>}, {transform_indices = @transform_1, window_bounds = array<i64: 16, 128>}, {transform_indices = @transform_2, window_bounds = array<i64: 8, 128>}]} {
    %c0_i32 = arith.constant 0 : i32
    %0 = arith.cmpi eq, %arg1, %c0_i32 : i32
    %1 = arith.extui %0 : i1 to i32
    %c0_i32_0 = arith.constant 0 : i32
    %2 = arith.cmpi ne, %1, %c0_i32_0 : i32
    scf.if %2 {
      %cst_19 = arith.constant 0.000000e+00 : f32
      %39 = vector.broadcast %cst_19 : f32 to vector<8x128xf32>
      %c0_20 = arith.constant 0 : index
      %c0_21 = arith.constant 0 : index
      %40 = vector.load %arg4[%c0_20, %c0_21] : memref<8x128xf32, #tpu.memory_space<vmem>>, vector<8x128xf32>
      tpu.vector_store %arg4[%c0_20, %c0_21], %39 {strides = array<i32>} : memref<8x128xf32, #tpu.memory_space<vmem>>, vector<8x128xf32>,
    } else {
    }
    %c0 = arith.constant 0 : index
    %c0_1 = arith.constant 0 : index
    %3 = vector.load %arg2[%c0, %c0_1] : memref<16x128xf32, #tpu.memory_space<vmem>>, vector<16x128xf32>
    %c0_2 = arith.constant 0 : index
    %c0_3 = arith.constant 0 : index
    %4 = vector.load %arg3[%c0_2, %c0_3] : memref<16x128xf32, #tpu.memory_space<vmem>>, vector<16x128xf32>
    %cst = arith.constant 5.000000e-02 : f32
    %5 = vector.broadcast %cst : f32 to vector<16x128xf32>
    %6 = arith.cmpf olt, %4, %5 : vector<16x128xf32>
    %cst_4 = arith.constant 1.000000e+00 : f32
    %7 = vector.broadcast %cst_4 : f32 to vector<16x128xf32>
    %8 = arith.select %6, %7, %4 : vector<16x128xi1>, vector<16x128xf32>
    %cst_5 = arith.constant 5.000000e-01 : f32
    %9 = vector.broadcast %cst_5 : f32 to vector<16x128xf32>
    %10 = arith.cmpf olt, %8, %9 : vector<16x128xf32>
    %cst_6 = arith.constant 2.000000e+01 : f32
    %11 = vector.broadcast %cst_6 : f32 to vector<16x128xf32>
    %12 = arith.select %10, %11, %8 : vector<16x128xi1>, vector<16x128xf32>
    %cst_7 = arith.constant 1.000000e+00 : f32
    %13 = vector.broadcast %cst_7 : f32 to vector<16x128xf32>
    %14 = arith.cmpf olt, %12, %13 : vector<16x128xf32>
    %cst_8 = arith.constant 5.000000e+01 : f32
    %15 = vector.broadcast %cst_8 : f32 to vector<16x128xf32>
    %16 = arith.select %14, %15, %12 : vector<16x128xi1>, vector<16x128xf32>
    %cst_9 = arith.constant 2.500000e+00 : f32
    %17 = vector.broadcast %cst_9 : f32 to vector<16x128xf32>
    %18 = arith.cmpf olt, %16, %17 : vector<16x128xf32>
    %cst_10 = arith.constant 1.000000e+02 : f32
    %19 = vector.broadcast %cst_10 : f32 to vector<16x128xf32>
    %20 = arith.select %18, %19, %16 : vector<16x128xi1>, vector<16x128xf32>
    %cst_11 = arith.constant 5.000000e+00 : f32
    %21 = vector.broadcast %cst_11 : f32 to vector<16x128xf32>
    %22 = arith.cmpf olt, %20, %21 : vector<16x128xf32>
    %cst_12 = arith.constant 3.000000e+02 : f32
    %23 = vector.broadcast %cst_12 : f32 to vector<16x128xf32>
    %24 = arith.select %22, %23, %20 : vector<16x128xi1>, vector<16x128xf32>
    %25 = arith.subf %4, %3 : vector<16x128xf32>
    %26 = arith.mulf %24, %25 : vector<16x128xf32>
    %27 = arith.mulf %26, %25 : vector<16x128xf32>
    %c1_i32 = arith.constant 1 : i32
    %28 = arith.muli %arg0, %c1_i32 : i32
    %29 = arith.addi %28, %arg1 : i32
    %c16_i32 = arith.constant 16 : i32
    %30 = arith.muli %29, %c16_i32 : i32
    %c16_i32_13 = arith.constant 16 : i32
    %31 = arith.addi %30, %c16_i32_13 : i32
    %c16_i32_14 = arith.constant 16 : i32
    %32 = arith.cmpi sle, %31, %c16_i32_14 : i32
    %33 = arith.extui %32 : i1 to i32
    %c0_i32_15 = arith.constant 0 : i32
    %34 = arith.cmpi ne, %33, %c0_i32_15 : i32
    scf.if %34 {
      %c0_19 = arith.constant 0 : index
      %c0_20 = arith.constant 0 : index
      %39 = vector.load %arg4[%c0_19, %c0_20] : memref<8x128xf32, #tpu.memory_space<vmem>>, vector<8x128xf32>
      %40 = vector.shape_cast %27 : vector<16x128xf32> to vector<2x8x128xf32>
      %cst_21 = arith.constant dense<0.000000e+00> : vector<8x128xf32>
      %41 = vector.multi_reduction <add>, %40, %cst_21 [0] : vector<2x8x128xf32> to vector<8x128xf32>
      %42 = arith.addf %39, %41 : vector<8x128xf32>
      %c0_22 = arith.constant 0 : index
      %c0_23 = arith.constant 0 : index
      %43 = vector.load %arg4[%c0_22, %c0_23] : memref<8x128xf32, #tpu.memory_space<vmem>>, vector<8x128xf32>
      tpu.vector_store %arg4[%c0_22, %c0_23], %42 {strides = array<i32>} : memref<8x128xf32, #tpu.memory_space<vmem>>, vector<8x128xf32>,
    } else {
    }
    %c16_i32_16 = arith.constant 16 : i32
    %35 = arith.addi %30, %c16_i32_16 : i32
    %c16_i32_17 = arith.constant 16 : i32
    %36 = arith.cmpi sgt, %35, %c16_i32_17 : i32
    %37 = arith.extui %36 : i1 to i32
    %c0_i32_18 = arith.constant 0 : i32
    %38 = arith.cmpi ne, %37, %c0_i32_18 : i32
    scf.if %38 {
      %39 = tpu.iota {dimensions = array<i32: 0>} : vector<16x1xi32>
      %40 = vector.broadcast %30 : i32 to vector<16x1xi32>
      %41 = arith.addi %40, %39 : vector<16x1xi32>
      %c16_i32_19 = arith.constant 16 : i32
      %42 = vector.broadcast %c16_i32_19 : i32 to vector<16x1xi32>
      %43 = arith.cmpi slt, %41, %42 : vector<16x1xi32>
      %cst_20 = arith.constant 0.000000e+00 : f32
      %44 = vector.shape_cast %43 : vector<16x1xi1> to vector<16x1xi1>
      %45 = vector.broadcast %44 : vector<16x1xi1> to vector<16x128xi1>
      %46 = vector.broadcast %cst_20 : f32 to vector<16x128xf32>
      %47 = arith.select %45, %27, %46 : vector<16x128xi1>, vector<16x128xf32>
      %c0_21 = arith.constant 0 : index
      %c0_22 = arith.constant 0 : index
      %48 = vector.load %arg4[%c0_21, %c0_22] : memref<8x128xf32, #tpu.memory_space<vmem>>, vector<8x128xf32>
      %49 = vector.shape_cast %47 : vector<16x128xf32> to vector<2x8x128xf32>
      %cst_23 = arith.constant dense<0.000000e+00> : vector<8x128xf32>
      %50 = vector.multi_reduction <add>, %49, %cst_23 [0] : vector<2x8x128xf32> to vector<8x128xf32>
      %51 = arith.addf %48, %50 : vector<8x128xf32>
      %c0_24 = arith.constant 0 : index
      %c0_25 = arith.constant 0 : index
      %52 = vector.load %arg4[%c0_24, %c0_25] : memref<8x128xf32, #tpu.memory_space<vmem>>, vector<8x128xf32>
      tpu.vector_store %arg4[%c0_24, %c0_25], %51 {strides = array<i32>} : memref<8x128xf32, #tpu.memory_space<vmem>>, vector<8x128xf32>,
    } else {
    }
    return
  }
  func.func @transform_0(%arg0: i32, %arg1: i32) -> (i32, i32) {
    %c1_i32 = arith.constant 1 : i32
    %0 = arith.muli %arg0, %c1_i32 : i32
    %1 = arith.addi %0, %arg1 : i32
    %c0_i32 = arith.constant 0 : i32
    %2 = arith.minsi %1, %c0_i32 : i32
    %c0_i32_0 = arith.constant 0 : i32
    %c0_i32_1 = arith.constant 0 : i32
    return %2, %c0_i32_0 : i32, i32
  }
  func.func @transform_1(%arg0: i32, %arg1: i32) -> (i32, i32) {
    %c1_i32 = arith.constant 1 : i32
    %0 = arith.muli %arg0, %c1_i32 : i32
    %1 = arith.addi %0, %arg1 : i32
    %c0_i32 = arith.constant 0 : i32
    %2 = arith.minsi %1, %c0_i32 : i32
    %c0_i32_0 = arith.constant 0 : i32
    %c0_i32_1 = arith.constant 0 : i32
    return %2, %c0_i32_0 : i32, i32
  }
  func.func @transform_2(%arg0: i32, %arg1: i32) -> (i32, i32) {
    %c0_i32 = arith.constant 0 : i32
    %c0_i32_0 = arith.constant 0 : i32
    return %arg0, %c0_i32 : i32, i32
  }
}

</mosaic_0001>

<llo_original>
// kernel: tpu_custom_call.1
$region0: #{tpu_custom_call.1}
  #allocation0 [shape = 'u32[]', space=smem, size = 0x4, offset = 0x4, fixed_abs, tag = 'smem constant byte address 0x4 - core index']
  #allocation1 [shape = 'u32[144,128]{1,0:T(1,128)}', space=vmem, size = 0x12000, scoped, tag = 'internal scratch']
  %s0 = inlined_call_operand.hbm [shape: f32[16,128], index: 0, kind: input, shape index: {}]
  %s1 = inlined_call_operand.hbm [shape: f32[16,128], index: 1, kind: input, shape index: {}]
  %s2 = inlined_call_operand.hbm [shape: f32[8,128], index: 2, kind: output, shape index: {}]
  %s3 = sld [smem:[#allocation0]]
  $region38: #{tpu_custom_call.1} parent=0
    _
  %s5 = ssub.s32 1, %s3
  %s6 = scalar_select 0, %s5, %s3
  $region1: #{tpu_custom_call.1} parent=0
    #allocation2 [shape = 'u8[8192]{0}', space=vmem, size = 0x2000, scoped, tag = 'input window, operand 0, single buffered']
    #allocation3 [shape = 's32[1]{0}', space=sflag, size = 0x4, scoped, tag = 'scoped memory for tpu_custom_call.1']
    #allocation4 [shape = 's32[1]{0}', space=sflag, size = 0x4, scoped, tag = 'scoped memory for tpu_custom_call.1']
    #allocation5 [shape = 'u8[8192]{0}', space=vmem, size = 0x2000, scoped, tag = 'input window, operand 1, single buffered']
    #allocation6 [shape = 's32[1]{0}', space=sflag, size = 0x4, scoped, tag = 'scoped memory for tpu_custom_call.1']
    #allocation7 [shape = 'u8[4096]{0}', space=vmem, size = 0x1000, scoped, tag = 'output window, operand 0, single buffered']
    %7 = vsyncpa [#allocation3], 0
    %8 = vsyncpa [#allocation6], 0
    %9 = vsyncpa [#allocation4], 0
    // Predicated region
    $region2: #{tpu_custom_call.1} parent=1 // pred_check
      _
    $region3: #{tpu_custom_call.1} parent=1 // pred_check_branch
      %11 = sbr.rel (0) target = $region5
    $region4: #{tpu_custom_call.1} parent=1 // pred_region
      %s12 = sadd.s32 0, 0
      %p13 = scmp.lt.s32.totalorder %s12, 0
      %s14 = scalar_select %p13, %s12, 0
      %s15 = smul.u32 2, %s14
      %s17 = ssub.s32 256, 256
      %18 = vsyncadd [#allocation3], %s17
      %s19 = smul.addr %s15, 128
      %s20 = scalar_lea.hbm %s0, %s19
      %s21 = sshll.u32 [#allocation2], 4
      %s22 = int_to_ptr.vmem [resolvable:$true] %s21
      %27 = dma.hbm_to_vmem [thread:$0]  %s20, 256, %s22, [#allocation3], 128, 128, 8
    $region5: #{tpu_custom_call.1} parent=1 // pred_fallthru
      _
    // Predicated region
    $region6: #{tpu_custom_call.1} parent=1 // pred_check
      _
    $region7: #{tpu_custom_call.1} parent=1 // pred_check_branch
      %29 = sbr.rel (0) target = $region9
    $region8: #{tpu_custom_call.1} parent=1 // pred_region
      %s30 = sadd.s32 0, 0
      %p31 = scmp.lt.s32.totalorder %s30, 0
      %s32 = scalar_select %p31, %s30, 0
      %s33 = smul.u32 2, %s32
      %s35 = ssub.s32 256, 256
      %36 = vsyncadd [#allocation6], %s35
      %s37 = smul.addr %s33, 128
      %s38 = scalar_lea.hbm %s1, %s37
      %s39 = sshll.u32 [#allocation5], 4
      %s40 = int_to_ptr.vmem [resolvable:$true] %s39
      %45 = dma.hbm_to_vmem [thread:$0]  %s38, 256, %s40, [#allocation6], 128, 128, 8
    $region9: #{tpu_custom_call.1} parent=1 // pred_fallthru
      _
    // Predicated region
    $region10: #{tpu_custom_call.1} parent=1 // pred_check
      _
    $region11: #{tpu_custom_call.1} parent=1 // pred_check_branch
      %47 = sbr.rel (0) target = $region13
    $region12: #{tpu_custom_call.1} parent=1 // pred_region
      %48 = dma.done [#allocation3], 256
    $region13: #{tpu_custom_call.1} parent=1 // pred_fallthru
      _
    // Predicated region
    $region14: #{tpu_custom_call.1} parent=1 // pred_check
      _
    $region15: #{tpu_custom_call.1} parent=1 // pred_check_branch
      %50 = sbr.rel (0) target = $region17
    $region16: #{tpu_custom_call.1} parent=1 // pred_region
      %51 = dma.done [#allocation6], 256
    $region17: #{tpu_custom_call.1} parent=1 // pred_fallthru
      _
    %s52 = sadd.s32 0, 0
    %p53 = scmp.lt.s32.totalorder %s52, 0
    %s54 = scalar_select %p53, %s52, 0
    %s55 = smul.u32 2, %s54
    %s56 = sadd.s32 0, 0
    %p57 = scmp.lt.s32.totalorder %s56, 0
    %s58 = scalar_select %p57, %s56, 0
    %s59 = smul.u32 2, %s58
    %p60 = scmp.eq.s32.totalorder 0, 0
    // Predicated region
    $region18: #{tpu_custom_call.1} parent=1 // pred_check
      %p61 = pneg %p60
    $region19: #{tpu_custom_call.1} parent=1 // pred_check_branch
      %63 = sbr.rel (%p61) target = $region21
    $region20: #{tpu_custom_call.1} parent=1 // pred_region
      %64 = vst [vmem:[#allocation7] sm:$0xff] 0.0
    $region21: #{tpu_custom_call.1} parent=1 // pred_fallthru
      _
    %v65 = vld [vmem:[#allocation2] sm:$0xff]
    %v66 = vld [vmem:[#allocation2 + $0x8] sm:$0xff]
    %v67 = vld [vmem:[#allocation5] sm:$0xff]
    %v68 = vld [vmem:[#allocation5 + $0x8] sm:$0xff]
    %vm69 = vcmp.lt.f32.partialorder %v67, 0.05
    %vm70 = vcmp.lt.f32.partialorder %v68, 0.05
    %v71 = vsel %vm69, 1.0, %v67
    %v72 = vsel %vm70, 1.0, %v68
    %vm73 = vcmp.lt.f32.partialorder %v71, 0.5
    %vm74 = vcmp.lt.f32.partialorder %v72, 0.5
    %v75 = vsel %vm73, 20.0, %v71
    %v76 = vsel %vm74, 20.0, %v72
    %vm77 = vcmp.lt.f32.partialorder %v75, 1.0
    %vm78 = vcmp.lt.f32.partialorder %v76, 1.0
    %v79 = vsel %vm77, 50.0, %v75
    %v80 = vsel %vm78, 50.0, %v76
    %vm81 = vcmp.lt.f32.partialorder %v79, 2.5
    %vm82 = vcmp.lt.f32.partialorder %v80, 2.5
    %v83 = vsel %vm81, 100.0, %v79
    %v84 = vsel %vm82, 100.0, %v80
    %vm85 = vcmp.lt.f32.partialorder %v83, 5.0
    %vm86 = vcmp.lt.f32.partialorder %v84, 5.0
    %v87 = vsel %vm85, 300.0, %v83
    %v88 = vsel %vm86, 300.0, %v84
    %v89 = vsub.f32 %v67, %v65
    %v90 = vsub.f32 %v68, %v66
    %v91 = vmul.f32 %v87, %v89
    %v92 = vmul.f32 %v88, %v90
    %v93 = vmul.f32 %v91, %v89
    %v94 = vmul.f32 %v92, %v90
    %s95 = sadd.s32 0, 0
    %s96 = smul.u32 %s95, 16
    %s97 = sadd.s32 %s96, 16
    %p98 = scmp.le.s32.totalorder %s97, 16
    // Predicated region
    $region22: #{tpu_custom_call.1} parent=1 // pred_check
      %p99 = pneg %p98
    $region23: #{tpu_custom_call.1} parent=1 // pred_check_branch
      %101 = sbr.rel (%p99) target = $region25
    $region24: #{tpu_custom_call.1} parent=1 // pred_region
      %v102 = vld [vmem:[#allocation7] sm:$0xff]
      %v103 = vadd.f32 %v93, %v94
      %v104 = vadd.f32 %v102, %v103
      %105 = vst [vmem:[#allocation7] sm:$0xff] %v104
    $region25: #{tpu_custom_call.1} parent=1 // pred_fallthru
      _
    %p106 = scmp.gt.s32.totalorder %s97, 16
    // Predicated region
    $region26: #{tpu_custom_call.1} parent=1 // pred_check
      %p107 = pneg %p106
    $region27: #{tpu_custom_call.1} parent=1 // pred_check_branch
      %109 = sbr.rel (%p107) target = $region29
    $region28: #{tpu_custom_call.1} parent=1 // pred_region
      %v110 = vlaneseq
      %v111 = vshrl.u32 %v110, 7
      %v112 = vadd.s32 %v111, 8
      %v113 = vstv %s96
      %v114 = vadd.s32 %v113, %v111
      %v115 = vadd.s32 %v113, %v112
      %vm116 = vcmp.lt.s32.totalorder %v114, 16
      %vm117 = vcmp.lt.s32.totalorder %v115, 16
      %v118 = vsel %vm116, 1, 0
      %v119 = vsel %vm117, 1, 0
      %vm120 = vcmp.eq.s32.totalorder %v118, 1
      %vm121 = vcmp.eq.s32.totalorder %v119, 1
      %v122 = vsel %vm120, %v93, 0.0
      %v123 = vsel %vm121, %v94, 0.0
      %v124 = vld [vmem:[#allocation7] sm:$0xff]
      %v125 = vadd.f32 %v122, %v123
      %v126 = vadd.f32 %v124, %v125
      %127 = vst [vmem:[#allocation7] sm:$0xff] %v126
    $region29: #{tpu_custom_call.1} parent=1 // pred_fallthru
      _
    // Predicated region
    $region30: #{tpu_custom_call.1} parent=1 // pred_check
      _
    $region31: #{tpu_custom_call.1} parent=1 // pred_check_branch
      %129 = sbr.rel (0) target = $region33
    $region32: #{tpu_custom_call.1} parent=1 // pred_region
      %s131 = ssub.s32 128, 128
      %132 = vsyncadd [#allocation4], %s131
      %s134 = sshll.u32 [#allocation7], 4
      %s135 = int_to_ptr.vmem [resolvable:$true] %s134
      %137 = dma.vmem_to_hbm [thread:$0]  %s135, 128, %s2, [#allocation4]
    $region33: #{tpu_custom_call.1} parent=1 // pred_fallthru
      _
    // Predicated region
    $region34: #{tpu_custom_call.1} parent=1 // pred_check
      _
    $region35: #{tpu_custom_call.1} parent=1 // pred_check_branch
      %139 = sbr.rel (0) target = $region37
    $region36: #{tpu_custom_call.1} parent=1 // pred_region
      %140 = dma.done [#allocation4], 128
    $region37: #{tpu_custom_call.1} parent=1 // pred_fallthru
      _
    %141 = vsyncpa [#allocation3], 1
    %142 = vsyncpa [#allocation6], 1
    %143 = vsyncpa [#allocation4], 1

</llo_original>
